<compile_context>
chip_gen: v5e
topology: v5e:2x2
jax: 0.10.0
libtpu: 0.0.40
codegen_flags: <defaults>
</compile_context>

<pallas_src>
import jax
import jax.numpy as jnp
from jax.experimental import pallas as pl
from jax.experimental.pallas import tpu as pltpu


# --------------------------------------------------------------------------- #
# Helpers
# --------------------------------------------------------------------------- #
def _round_up(x, m):
    return (x + m - 1) // m * m


def _sublane_multiple(dtype):
    """Second-minor (sublane) alignment required by the TPU vreg for `dtype`."""
    itemsize = jnp.dtype(dtype).itemsize
    return {4: 8, 2: 16, 1: 32}.get(itemsize, 8)


def _pick_tile(dim, max_tile, align, prefer_exact=False):
    """Pick a tile (multiple of `align`, <= max_tile) for a dimension of size `dim`.

    Prefers (a) exact divisors when requested (K: avoids per-call zero-padding),
    then (b) the largest tile whose padding waste is <= dim/8, else (c) the
    minimal-waste candidate (largest on ties).
    """
    dim_aligned = _round_up(dim, align)
    if dim_aligned <= max_tile:
        return dim_aligned
    candidates = list(range(max_tile, align - 1, -align))  # descending
    if prefer_exact:
        for c in candidates:
            if dim % c == 0:
                return c
    best = None
    for c in candidates:
        waste = _round_up(dim, c) - dim
        if waste * 8 <= dim:
            return c
        if best is None or waste < best[0]:
            best = (waste, c)
    return best[1]


def _vmem_limit(needed_bytes):
    # 1.5x headroom over the computed tile footprint; at least the 32 MiB scoped
    # default, never above v7x's 64 MiB physical VMEM per TensorCore.
    return int(min(64 * 1024 * 1024, max(32 * 1024 * 1024, needed_bytes * 3 // 2)))


# --------------------------------------------------------------------------- #
# Kernels
# --------------------------------------------------------------------------- #
def _linear_resident_kernel(x_ref, w_ref, b_ref, o_ref):
    # W^T (K, N) and bias are VMEM-resident (same block every step); the grid
    # runs over M only, so this is a pure x-stream: one dot + bias per tile.
    acc = jnp.dot(x_ref[...], w_ref[...], preferred_element_type=jnp.float32)
    o_ref[...] = (acc + b_ref[...].astype(jnp.float32)).astype(o_ref.dtype)


def _linear_kernel_accum_in_out(x_ref, w_ref, b_ref, o_ref):
    # f32 output: accumulate directly into the resident output block (no scratch).
    # NOTE: correctness requires K to stay the innermost ("arbitrary") grid axis.
    k = pl.program_id(2)

    @pl.when(k == 0)
    def _():
        o_ref[...] = jnp.zeros_like(o_ref)

    o_ref[...] += jnp.dot(x_ref[...], w_ref[...], preferred_element_type=jnp.float32)

    @pl.when(k == pl.num_programs(2) - 1)
    def _():
        o_ref[...] += b_ref[...].astype(jnp.float32)


def _linear_kernel_scratch_acc(x_ref, w_ref, b_ref, o_ref, acc_ref):
    # Non-f32 output: f32 VMEM accumulator, single cast on the final K step.
    k = pl.program_id(2)

    @pl.when(k == 0)
    def _():
        acc_ref[...] = jnp.zeros_like(acc_ref)

    acc_ref[...] += jnp.dot(x_ref[...], w_ref[...], preferred_element_type=jnp.float32)

    @pl.when(k == pl.num_programs(2) - 1)
    def _():
        o_ref[...] = (acc_ref[...] + b_ref[...].astype(jnp.float32)).astype(o_ref.dtype)


# --------------------------------------------------------------------------- #
# Wrapper / factory
# --------------------------------------------------------------------------- #
def make_linear_forward(weight, bias, *, max_tm=1024, max_tn=1024, max_tk=512,
                        compute_dtype=None, force_tiled=False):
    """Build a jitted forward(x) = x @ weight.T + bias (torch.nn.Linear semantics).

    weight: (N, K) in torch layout; bias: (N,).  Weight is transposed (and, if
    needed, zero-padded along K) exactly once here and cached, so per-call work
    is only the Pallas kernel itself.
    """
    N, K = weight.shape
    assert bias.shape == (N,), "bias must be (outputsize,)"

    w_t = jnp.asarray(weight).T                      # (K, N) — done once
    if compute_dtype is not None:
        w_t = w_t.astype(compute_dtype)
    bias2d = jnp.asarray(bias).reshape(1, N)
    w_itemsize = jnp.dtype(w_t.dtype).itemsize

    # Small-N / small-K deployment path: hold W^T + bias fully VMEM-resident.
    resident = (not force_tiled) and (K <= 2048) and (N <= 1024) \
        and (K * N * w_itemsize <= 4 * 1024 * 1024)

    if resident:
        tk, Kp, w_prep = K, K, w_t
    else:
        tk = K if K <= max_tk else _pick_tile(K, max_tk, 128, prefer_exact=True)
        Kp = _round_up(K, tk)
        # Zero-pad along K only (garbage along K would corrupt the reduction).
        w_prep = jnp.pad(w_t, ((0, Kp - K), (0, 0))) if Kp != K else w_t

    def forward(x):
        M, Kx = x.shape
        assert Kx == K, "x last dim must equal inputsize"
        out_dtype = x.dtype
        xc = x if compute_dtype is None else x.astype(compute_dtype)
        x_itemsize = jnp.dtype(xc.dtype).itemsize
        out_itemsize = jnp.dtype(out_dtype).itemsize
        sub = _sublane_multiple(xc.dtype)

        cost = pl.CostEstimate(
            flops=2 * M * N * K,
            transcendentals=0,
            bytes_accessed=(M * K * x_itemsize + K * N * w_itemsize
                            + N * w_itemsize + M * N * out_itemsize),
        )

        if resident:
            tm = min(max_tm, _round_up(M, sub))
            # Give both v7x TensorCores work when M allows it.
            if pl.cdiv(M, tm) == 1 and M >= 2 * sub:
                tm = _round_up(pl.cdiv(M, 2), sub)
            grid = (pl.cdiv(M, tm),)
            vmem_bytes = (2 * tm * K * x_itemsize                 # double-buffered x
                          + K * N * w_itemsize + N * w_itemsize   # resident W^T + bias
                          + 2 * tm * N * out_itemsize)            # double-buffered out
            return pl.pallas_call(
                _linear_resident_kernel,
                out_shape=jax.ShapeDtypeStruct((M, N), out_dtype),
                grid_spec=pltpu.PrefetchScalarGridSpec(
                    num_scalar_prefetch=0,
                    grid=grid,
                    in_specs=[
                        pl.BlockSpec((tm, K), lambda i: (i, 0)),   # x tile (stream)
                        pl.BlockSpec((K, N), lambda i: (0, 0)),    # W^T resident
                        pl.BlockSpec((1, N), lambda i: (0, 0)),    # bias resident
                    ],
                    out_specs=pl.BlockSpec((tm, N), lambda i: (i, 0)),
                ),
                compiler_params=pltpu.CompilerParams(
                    dimension_semantics=("parallel",),
                    vmem_limit_bytes=_vmem_limit(vmem_bytes),
                ),
                cost_estimate=cost,
            )(xc, w_prep, bias2d)

        # General large-GEMM path: (M, N, K) grid, K innermost (reduction axis).
        tm = _pick_tile(M, max_tm, sub)
        tn = _pick_tile(N, max_tn, 128)
        # Keep >= 2 blocks in the parallel (i, j) dims so both v7x cores get work.
        if pl.cdiv(M, tm) * pl.cdiv(N, tn) < 2:
            if M >= 2 * sub:
                tm = _round_up(pl.cdiv(M, 2), sub)
            elif N >= 256:
                tn = _round_up(pl.cdiv(N, 2), 128)

        # Only K is padded (per call, and only if tk does not divide K exactly).
        x_p = jnp.pad(xc, ((0, 0), (0, Kp - K))) if Kp != K else xc
        grid = (pl.cdiv(M, tm), pl.cdiv(N, tn), Kp // tk)

        acc_in_out = out_dtype == jnp.float32
        kernel = _linear_kernel_accum_in_out if acc_in_out else _linear_kernel_scratch_acc
        scratch = [] if acc_in_out else [pltpu.VMEM((tm, tn), jnp.float32)]

        vmem_bytes = (2 * (tm * tk * x_itemsize + tk * tn * w_itemsize)
                      + 2 * tm * tn * out_itemsize
                      + 2 * tn * w_itemsize
                      + (0 if acc_in_out else tm * tn * 4))

        return pl.pallas_call(
            kernel,
            out_shape=jax.ShapeDtypeStruct((M, N), out_dtype),
            grid_spec=pltpu.PrefetchScalarGridSpec(
                num_scalar_prefetch=0,
                grid=grid,
                in_specs=[
                    pl.BlockSpec((tm, tk), lambda i, j, k: (i, k)),   # x tile
                    pl.BlockSpec((tk, tn), lambda i, j, k: (k, j)),   # W^T tile
                    pl.BlockSpec((1, tn), lambda i, j, k: (0, j)),    # bias tile
                ],
                out_specs=pl.BlockSpec((tm, tn), lambda i, j, k: (i, j)),
                scratch_shapes=scratch,
            ),
            compiler_params=pltpu.CompilerParams(
                dimension_semantics=("parallel", "parallel", "arbitrary"),
                vmem_limit_bytes=_vmem_limit(vmem_bytes),
            ),
            cost_estimate=cost,
        )(x_p, w_prep, bias2d)

    return jax.jit(forward)


# --------------------------------------------------------------------------- #
# Demo / self-test
# --------------------------------------------------------------------------- #
if __name__ == "__main__":
    key = jax.random.PRNGKey(0)

    # ---- 1) The module's actual shapes: nn.Linear(32, 16) on a batch of 8 ----
    batch, inputsize, outputsize = 8, 32, 16
    kx, kw, kb = jax.random.split(key, 3)
    x = jax.random.normal(kx, (batch, inputsize), dtype=jnp.float32)
    bound = 1.0 / jnp.sqrt(jnp.float32(inputsize))
    weight = jax.random.uniform(kw, (outputsize, inputsize), dtype=jnp.float32,
                                minval=-bound, maxval=bound)
    bias = jax.random.uniform(kb, (outputsize,), dtype=jnp.float32,
                              minval=-bound, maxval=bound)

    forward = make_linear_forward(weight, bias)          # resident (small-N) path
    out = jax.block_until_ready(forward(x))
    ref = x @ weight.T + bias
    assert out.shape == (batch, outputsize)
    assert jnp.allclose(out, ref, atol=1e-5, rtol=1e-5)

    # ---- 2) Exercise the tiled (M, N, K) path with ragged M/N edge blocks ----
    M2, K2, N2 = 300, 384, 200
    kx2, kw2, kb2 = jax.random.split(jax.random.PRNGKey(1), 3)
    x2 = jax.random.normal(kx2, (M2, K2), dtype=jnp.float32)
    w2 = jax.random.normal(kw2, (N2, K2), dtype=jnp.float32) * 0.05
    b2 = jax.random.normal(kb2, (N2,), dtype=jnp.float32) * 0.05

    forward2 = make_linear_forward(w2, b2, force_tiled=True,
                                   max_tm=256, max_tn=128, max_tk=128)
    out2 = jax.block_until_ready(forward2(x2))
    ref2 = x2 @ w2.T + b2
    assert out2.shape == (M2, N2)
    assert jnp.allclose(out2, ref2, atol=1e-3, rtol=1e-3)

    print("KERNEL_OK")
</pallas_src>

<mosaic_0001>
module attributes {stable_mosaic.version = 11 : i64} {
  func.func @_linear_resident_kernel(%arg0: i32, %arg1: memref<8x32xf32, #tpu.memory_space<vmem>>, %arg2: memref<32x16xf32, #tpu.memory_space<vmem>>, %arg3: memref<1x16xf32, #tpu.memory_space<vmem>>, %arg4: memref<8x16xf32, #tpu.memory_space<vmem>>) attributes {dimension_semantics = [#tpu.dimension_semantics<parallel>], iteration_bounds = array<i64: 1>, scalar_prefetch = 0 : i64, scratch_operands = 0 : i64, tpu.core_type = #tpu.core_type<tc>, window_params = [{transform_indices = @transform_0, window_bounds = array<i64: 8, 32>}, {pipeline_mode = #tpu.pipeline_mode<synchronous>, transform_indices = @transform_1, window_bounds = array<i64: 32, 16>}, {pipeline_mode = #tpu.pipeline_mode<synchronous>, transform_indices = @transform_2, window_bounds = array<i64: 1, 16>}, {transform_indices = @transform_3, window_bounds = array<i64: 8, 16>}]} {
    %c0 = arith.constant 0 : index
    %c0_0 = arith.constant 0 : index
    %0 = vector.load %arg1[%c0, %c0_0] : memref<8x32xf32, #tpu.memory_space<vmem>>, vector<8x32xf32>
    %c0_1 = arith.constant 0 : index
    %c0_2 = arith.constant 0 : index
    %1 = vector.load %arg2[%c0_1, %c0_2] : memref<32x16xf32, #tpu.memory_space<vmem>>, vector<32x16xf32>
    %cst = arith.constant dense<0.000000e+00> : vector<8x16xf32>
    %2 = tpu.matmul %0, %1, %cst {dimension_numbers = #tpu.dot_dimension_numbers<[1], [0], [0], [1], [0, 0, 1, 1], [], []>} : vector<8x32xf32>, vector<32x16xf32>, vector<8x16xf32> -> vector<8x16xf32>
    %c0_3 = arith.constant 0 : index
    %c0_4 = arith.constant 0 : index
    %3 = vector.load %arg3[%c0_3, %c0_4] : memref<1x16xf32, #tpu.memory_space<vmem>>, vector<1x16xf32>
    %4 = vector.broadcast %3 : vector<1x16xf32> to vector<8x16xf32>
    %5 = arith.addf %2, %4 : vector<8x16xf32>
    %c0_5 = arith.constant 0 : index
    %c0_6 = arith.constant 0 : index
    %6 = vector.load %arg4[%c0_5, %c0_6] : memref<8x16xf32, #tpu.memory_space<vmem>>, vector<8x16xf32>
    tpu.vector_store %arg4[%c0_5, %c0_6], %5 {strides = array<i32>} : memref<8x16xf32, #tpu.memory_space<vmem>>, vector<8x16xf32>,
    return
  }
  func.func @transform_0(%arg0: i32) -> (i32, i32) {
    %c0_i32 = arith.constant 0 : i32
    %c0_i32_0 = arith.constant 0 : i32
    return %arg0, %c0_i32 : i32, i32
  }
  func.func @transform_1(%arg0: i32) -> (i32, i32) {
    %c0_i32 = arith.constant 0 : i32
    %c0_i32_0 = arith.constant 0 : i32
    %c0_i32_1 = arith.constant 0 : i32
    return %c0_i32, %c0_i32_0 : i32, i32
  }
  func.func @transform_2(%arg0: i32) -> (i32, i32) {
    %c0_i32 = arith.constant 0 : i32
    %c0_i32_0 = arith.constant 0 : i32
    %c0_i32_1 = arith.constant 0 : i32
    return %c0_i32, %c0_i32_0 : i32, i32
  }
  func.func @transform_3(%arg0: i32) -> (i32, i32) {
    %c0_i32 = arith.constant 0 : i32
    %c0_i32_0 = arith.constant 0 : i32
    return %arg0, %c0_i32 : i32, i32
  }
}

</mosaic_0001>

<llo_original>
// kernel: forward.1
$region0: #{forward.1}
  #allocation0 [shape = 'u32[]', space=smem, size = 0x4, offset = 0x4, fixed_abs, tag = 'smem constant byte address 0x4 - core index']
  #allocation1 [shape = 'u32[72,128]{1,0:T(1,128)}', space=vmem, size = 0x9000, scoped, tag = 'internal scratch']
  %s0 = inlined_call_operand.hbm [shape: f32[8,32], index: 0, kind: input, shape index: {}]
  %s1 = inlined_call_operand.hbm [shape: f32[32,16], index: 1, kind: input, shape index: {}]
  %s2 = inlined_call_operand.vmem [shape: f32[1,16], index: 2, kind: input, shape index: {}]
  %s3 = inlined_call_operand.hbm [shape: f32[8,16], index: 3, kind: output, shape index: {}]
  %s4 = sld [smem:[#allocation0]]
  $region30: #{forward.1} parent=0
    _
  %s6 = ssub.s32 1, %s4
  %s7 = scalar_select 0, %s6, %s4
  $region1: #{forward.1} parent=0
    #allocation2 [shape = 'u8[4096]{0}', space=vmem, size = 0x1000, scoped, tag = 'input window, operand 0, single buffered']
    #allocation3 [shape = 's32[1]{0}', space=sflag, size = 0x4, scoped, tag = 'scoped memory for forward.1']
    #allocation4 [shape = 's32[1]{0}', space=sflag, size = 0x4, scoped, tag = 'scoped memory for forward.1']
    #allocation5 [shape = 'u8[16384]{0}', space=vmem, size = 0x4000, scoped, tag = 'input window, operand 1, single buffered']
    #allocation6 [shape = 's32[1]{0}', space=sflag, size = 0x4, scoped, tag = 'scoped memory for forward.1']
    #allocation7 [shape = 'u8[4096]{0}', space=vmem, size = 0x1000, scoped, tag = 'output window, operand 0, single buffered']
    %8 = vsyncpa [#allocation3], 0
    %9 = vsyncpa [#allocation6], 0
    %10 = vsyncpa [#allocation4], 0
    // Predicated region
    $region2: #{forward.1} parent=1 // pred_check
      _
    $region3: #{forward.1} parent=1 // pred_check_branch
      %12 = sbr.rel (0) target = $region5
    $region4: #{forward.1} parent=1 // pred_region
      %14 = vsyncadd [#allocation3], 0
      %s16 = sshll.u32 %s0, 4
      %s17 = int_to_ptr.hbm [resolvable:$true] %s16
      %s18 = sshll.u32 [#allocation2], 4
      %s19 = int_to_ptr.vmem [resolvable:$true] %s18
      %21 = dma.hbm_to_vmem [thread:$0]  %s17, 128, %s19, [#allocation3]
    $region5: #{forward.1} parent=1 // pred_fallthru
      _
    // Predicated region
    $region6: #{forward.1} parent=1 // pred_check
      _
    $region7: #{forward.1} parent=1 // pred_check_branch
      %23 = sbr.rel (0) target = $region9
    $region8: #{forward.1} parent=1 // pred_region
      %25 = vsyncadd [#allocation6], 0
      %s26 = sshll.u32 %s1, 4
      %s27 = int_to_ptr.hbm [resolvable:$true] %s26
      %s28 = sshll.u32 [#allocation5], 4
      %s29 = int_to_ptr.vmem [resolvable:$true] %s28
      %34 = dma.hbm_to_vmem [thread:$0]  %s27, 512, %s29, [#allocation6], 128, 128, 8
    $region9: #{forward.1} parent=1 // pred_fallthru
      _
    // Predicated region
    $region10: #{forward.1} parent=1 // pred_check
      _
    $region11: #{forward.1} parent=1 // pred_check_branch
      %36 = sbr.rel (0) target = $region13
    $region12: #{forward.1} parent=1 // pred_region
      _
    $region13: #{forward.1} parent=1 // pred_fallthru
      _
    // Predicated region
    $region14: #{forward.1} parent=1 // pred_check
      _
    $region15: #{forward.1} parent=1 // pred_check_branch
      %38 = sbr.rel (0) target = $region17
    $region16: #{forward.1} parent=1 // pred_region
      %40 = dma.done [#allocation3], 128
    $region17: #{forward.1} parent=1 // pred_fallthru
      _
    // Predicated region
    $region18: #{forward.1} parent=1 // pred_check
      _
    $region19: #{forward.1} parent=1 // pred_check_branch
      %42 = sbr.rel (0) target = $region21
    $region20: #{forward.1} parent=1 // pred_region
      %44 = dma.done [#allocation6], 512
    $region21: #{forward.1} parent=1 // pred_fallthru
      _
    %v45 = vld [vmem:[#allocation2] sm:$0xff]
    %v46 = vld [vmem:[#allocation5] sm:$0xff]
    %v47 = vld [vmem:[#allocation5 + $0x8] sm:$0xff]
    %v48 = vld [vmem:[#allocation5 + $0x10] sm:$0xff]
    %v49 = vld [vmem:[#allocation5 + $0x18] sm:$0xff]
    %v50 = vld [vmem:[%s2] sm:$0x1]
    %v52 = vperm.slane %v50, 0
    %vm54 = vcmask 261120
    %v56 = vsel %vm54, %v45, 0
    %58 = vmatpush.msra.mxu0 0.0
    %59 = vmatpush.msra.mxu0 0.0
    %60 = vmatpush.msra.mxu0 0.0
    %61 = vmatpush.msra.mxu0 0.0
    %62 = vmatpush.msra.mxu0 0.0
    %63 = vmatpush.msra.mxu0 0.0
    %64 = vmatpush.msra.mxu0 0.0
    %65 = vmatpush.msra.mxu0 0.0
    %66 = vmatpush.msra.mxu0 0.0
    %67 = vmatpush.msra.mxu0 0.0
    %68 = vmatpush.msra.mxu0 0.0
    %69 = vmatpush.msra.mxu0 0.0
    %70 = vmatpush.msra.mxu0 %v49
    %71 = vmatpush.msra.mxu0 %v48
    %72 = vmatpush.msra.mxu0 %v47
    %73 = vmatpush.msra.mxu0 %v46
    %74 = vmatmul.f32.gmra.mxu0 %v56
    %v75 = vpop.f32.mrf.mxu0
    %v76 = vadd.f32 %v52, %v75
    %77 = vdwg.mxu0
    %vm78 = vcmask 130048
    %79 = vst.msk [vmem:[#allocation7] sm:$0xff] %vm78, %v76
    // Predicated region
    $region22: #{forward.1} parent=1 // pred_check
      _
    $region23: #{forward.1} parent=1 // pred_check_branch
      %81 = sbr.rel (0) target = $region25
    $region24: #{forward.1} parent=1 // pred_region
      %83 = vsyncadd [#allocation4], 0
      %s85 = sshll.u32 [#allocation7], 4
      %s86 = int_to_ptr.vmem [resolvable:$true] %s85
      %s87 = sshll.u32 %s3, 4
      %s88 = int_to_ptr.hbm [resolvable:$true] %s87
      %90 = dma.vmem_to_hbm [thread:$0]  %s86, 128, %s88, [#allocation4]
    $region25: #{forward.1} parent=1 // pred_fallthru
      _
    // Predicated region
    $region26: #{forward.1} parent=1 // pred_check
      _
    $region27: #{forward.1} parent=1 // pred_check_branch
      %92 = sbr.rel (0) target = $region29
    $region28: #{forward.1} parent=1 // pred_region
      %94 = dma.done [#allocation4], 128
    $region29: #{forward.1} parent=1 // pred_fallthru
      _
    %95 = vsyncpa [#allocation3], 1
    %96 = vsyncpa [#allocation6], 1
    %97 = vsyncpa [#allocation4], 1

</llo_original>
